<compile_context>
chip_gen: v5e
topology: v5e:2x2
jax: 0.10.0
libtpu: 0.0.40
codegen_flags: <defaults>
</compile_context>

<pallas_src>
import jax
import jax.numpy as jnp
from jax import lax
from jax.experimental import pallas as pl
from jax.experimental.pallas import tpu as pltpu


def _cdiv(a, b):
    return (a + b - 1) // b


def _masked_l1_kernel(nkt_ref, mnt_ref, lens_ref, pred_ref, gold_ref, out_ref):
    """Accumulates per-(row, feature) masked L1 sums into the resident output.

    Scalar-prefetch (SMEM):
      nkt_ref : (nb,) int32  -- per-batch-tile number of needed column steps (>=1)
      mnt_ref : (nb,) int32  -- per-batch-tile minimum length (for fast path)
    Blocks:
      lens_ref: (tb, 1, 1)   int32       -- per-row length (len_b <= L < 2^31)
      pred_ref: (tb, tl, D)  input dtype
      gold_ref: (tb, tl, D)  input dtype
      out_ref : (tb, 1, D)   f32         -- resident accumulator across k
    """
    i = pl.program_id(0)
    k = pl.program_id(1)
    _, tl, _ = pred_ref.shape

    @pl.when(k == 0)
    def _():
        out_ref[...] = jnp.zeros_like(out_ref)

    active = k < nkt_ref[i]                       # any row in this batch tile still live?
    interior = (k + 1) * tl <= mnt_ref[i]         # every timestep valid for every row?

    # Fast path: tile fully inside all rows' valid range -> no iota/mask/where.
    @pl.when(jnp.logical_and(active, interior))
    def _():
        diff = jnp.abs(pred_ref[...] - gold_ref[...])
        out_ref[...] += jnp.sum(diff.astype(jnp.float32), axis=1, keepdims=True)

    # Boundary path: mask each timestep with t < len_b (also zeroes any padded
    # / OOB-edge-block garbage, since jnp.where selects, NaN-safe).
    @pl.when(jnp.logical_and(active, jnp.logical_not(interior)))
    def _():
        t_local = lax.broadcasted_iota(jnp.int32, (1, tl, 1), 1)   # (1, tl, 1)
        thr_local = lens_ref[...] - k * tl                         # (tb, 1, 1)
        mask = t_local < thr_local                                 # (tb, tl, 1)
        diff = jnp.abs(pred_ref[...] - gold_ref[...])
        masked = jnp.where(mask, diff, jnp.zeros((), diff.dtype))
        out_ref[...] += jnp.sum(masked.astype(jnp.float32), axis=1, keepdims=True)


def stochastic_toucan_tts_loss(predicted_features, gold_features, features_lengths,
                               *, row_block=8, target_block_bytes=2 * 1024 * 1024):
    """Masked, length-normalized L1 loss — Pallas TPU kernel wrapper.

    predicted_features, gold_features: (B, Lmax, odim)
    features_lengths: (B,) int
    """
    B, L, D = predicted_features.shape
    itemsize = jnp.dtype(predicted_features.dtype).itemsize

    # --- tile selection over the NATIVE (B, L, D) layout (no big-tensor copies) ---
    tb = max(1, min(row_block, B))
    if B >= 2:
        # guarantee >= 2 programs on the parallel batch axis (v7x megacore).
        tb = min(tb, _cdiv(B, 2))
    nb = _cdiv(B, tb)

    # time-tile: multiple of 8 (sublane rule), sized for ~target bytes per input per step.
    tl = target_block_bytes // max(1, tb * D * itemsize)
    tl = max(8, (tl // 8) * 8)
    if tl >= L:
        tl = L                                   # full dim satisfies the (8,128) rule
    nk = _cdiv(L, tl)

    # --- tiny scalar side-inputs (only the (B,) lengths get padded/copied) ---
    B_pad = nb * tb
    lens = features_lengths.astype(jnp.int32)
    lens_pad = jnp.pad(lens, (0, B_pad - B))                     # zeros => masked out
    lens_in = lens_pad.reshape(B_pad, 1, 1)

    lens_tiles = lens_pad.reshape(nb, tb)
    max_len_tile = jnp.max(lens_tiles, axis=1)
    min_len_tile = jnp.min(lens_tiles, axis=1)
    # needed column steps per batch tile (>=1 so the index-map clamp stays valid).
    nkt = jnp.maximum(1, (max_len_tile + tl - 1) // tl).astype(jnp.int32)
    mnt = min_len_tile.astype(jnp.int32)

    grid_spec = pltpu.PrefetchScalarGridSpec(
        num_scalar_prefetch=2,
        grid=(nb, nk),
        in_specs=[
            # per-row lengths (tiny VMEM input, resident per batch tile)
            pl.BlockSpec((tb, 1, 1), lambda i, k, nkt, mnt: (i, 0, 0)),
            # predicted / gold: clamp k so fully-padded tiles repeat the previous
            # block index (pipeliner skips the re-fetch -> no HBM traffic).
            pl.BlockSpec((tb, tl, D),
                         lambda i, k, nkt, mnt: (i, jnp.minimum(k, nkt[i] - 1), 0)),
            pl.BlockSpec((tb, tl, D),
                         lambda i, k, nkt, mnt: (i, jnp.minimum(k, nkt[i] - 1), 0)),
        ],
        out_specs=pl.BlockSpec((tb, 1, D), lambda i, k, nkt, mnt: (i, 0, 0)),
    )

    per_row_feat = pl.pallas_call(
        _masked_l1_kernel,
        out_shape=jax.ShapeDtypeStruct((B_pad, 1, D), jnp.float32),
        grid_spec=grid_spec,
        compiler_params=pltpu.CompilerParams(
            # batch-tile axis independent (megacore-shardable); column axis is a
            # serial reduction into the resident output accumulator.
            dimension_semantics=("parallel", "arbitrary"),
            vmem_limit_bytes=32 * 1024 * 1024,
        ),
        cost_estimate=pl.CostEstimate(
            flops=3 * B * L * D,
            transcendentals=0,
            bytes_accessed=2 * B * L * D * itemsize + B_pad * D * 4,
        ),
    )(nkt, mnt, lens_in, predicted_features, gold_features)

    # Weighting hoisted entirely out of the kernel; guard zero-length rows
    # (matches PyTorch masked_select semantics: such rows contribute 0, no NaN).
    row_sums = jnp.sum(per_row_feat[:B, 0, :], axis=-1)          # (B,)
    lens_f = lens.astype(jnp.float32)
    denom = jnp.maximum(lens_f, 1.0) * jnp.float32(B * D)
    per_row = jnp.where(lens > 0, row_sums / denom, jnp.float32(0.0))
    return jnp.sum(per_row)


def _reference_loss(pred, gold, lengths):
    """Pure-JAX reference mirroring the PyTorch forward."""
    B, L, D = pred.shape
    l1 = jnp.abs(pred.astype(jnp.float32) - gold.astype(jnp.float32))       # (B, L, D)
    mask = (jnp.arange(L)[None, :] < lengths[:, None]).astype(jnp.float32)  # (B, L)
    mask = mask[..., None]                                                  # (B, L, 1)
    denom = jnp.maximum(jnp.sum(mask, axis=1, keepdims=True), 1.0)
    weights = mask / denom / (B * D)
    return jnp.sum(l1 * weights * mask)


if __name__ == "__main__":
    key = jax.random.PRNGKey(0)

    # Case 1: typical small shapes (B, Lmax, odim) = (2, 16, 32).
    B, Lmax, odim = 2, 16, 32
    k1, k2 = jax.random.split(key)
    predicted = jax.random.normal(k1, (B, Lmax, odim), dtype=jnp.float32)
    gold = jax.random.normal(k2, (B, Lmax, odim), dtype=jnp.float32)
    lengths = jnp.array([12, 9], dtype=jnp.int32)

    loss = jax.block_until_ready(stochastic_toucan_tts_loss(predicted, gold, lengths))
    ref = jax.block_until_ready(_reference_loss(predicted, gold, lengths))
    assert jnp.allclose(loss, ref, rtol=1e-5, atol=1e-6), (loss, ref)

    # Case 2: odd shapes (non-multiple-of-8/128 dims) + a zero-length utterance.
    B2, L2, D2 = 3, 17, 24
    k3, k4 = jax.random.split(k1)
    p2 = jax.random.normal(k3, (B2, L2, D2), dtype=jnp.float32)
    g2 = jax.random.normal(k4, (B2, L2, D2), dtype=jnp.float32)
    lens2 = jnp.array([17, 5, 0], dtype=jnp.int32)

    loss2 = jax.block_until_ready(stochastic_toucan_tts_loss(p2, g2, lens2))
    ref2 = jax.block_until_ready(_reference_loss(p2, g2, lens2))
    assert jnp.allclose(loss2, ref2, rtol=1e-5, atol=1e-6), (loss2, ref2)

    # Case 3: force multiple column tiles (small target_block_bytes) to exercise
    # the padded-tail DMA skip, the interior fast path, and partial edge blocks.
    B3, L3, D3 = 4, 200, 40
    k5, k6 = jax.random.split(k3)
    p3 = jax.random.normal(k5, (B3, L3, D3), dtype=jnp.float32)
    g3 = jax.random.normal(k6, (B3, L3, D3), dtype=jnp.float32)
    lens3 = jnp.array([200, 64, 130, 8], dtype=jnp.int32)

    loss3 = jax.block_until_ready(
        stochastic_toucan_tts_loss(p3, g3, lens3, target_block_bytes=8 * 1024))
    ref3 = jax.block_until_ready(_reference_loss(p3, g3, lens3))
    assert jnp.allclose(loss3, ref3, rtol=1e-4, atol=1e-6), (loss3, ref3)

    print("KERNEL_OK")
</pallas_src>

<mosaic_0001>
module attributes {stable_mosaic.version = 11 : i64} {
  func.func @_masked_l1_kernel(%arg0: i32, %arg1: i32, %arg2: memref<2xi32, #tpu.memory_space<smem>>, %arg3: memref<2xi32, #tpu.memory_space<smem>>, %arg4: memref<1x1x1xi32, #tpu.memory_space<vmem>>, %arg5: memref<1x16x32xf32, #tpu.memory_space<vmem>>, %arg6: memref<1x16x32xf32, #tpu.memory_space<vmem>>, %arg7: memref<1x1x32xf32, #tpu.memory_space<vmem>>) attributes {dimension_semantics = [#tpu.dimension_semantics<parallel>, #tpu.dimension_semantics<arbitrary>], iteration_bounds = array<i64: 2, 1>, scalar_prefetch = 2 : i64, scratch_operands = 0 : i64, tpu.core_type = #tpu.core_type<tc>, window_params = [{transform_indices = @transform_0, window_bounds = array<i64: 1, 1, 1>}, {transform_indices = @transform_1, window_bounds = array<i64: 1, 16, 32>}, {transform_indices = @transform_2, window_bounds = array<i64: 1, 16, 32>}, {transform_indices = @transform_3, window_bounds = array<i64: 1, 1, 32>}]} {
    %c0_i32 = arith.constant 0 : i32
    %0 = arith.cmpi eq, %arg1, %c0_i32 : i32
    %1 = arith.extui %0 : i1 to i32
    %c0_i32_0 = arith.constant 0 : i32
    %2 = arith.cmpi ne, %1, %c0_i32_0 : i32
    scf.if %2 {
      %cst = arith.constant 0.000000e+00 : f32
      %18 = vector.broadcast %cst : f32 to vector<1x1x32xf32>
      %c0 = arith.constant 0 : index
      %c0_3 = arith.constant 0 : index
      %c0_4 = arith.constant 0 : index
      %19 = vector.load %arg7[%c0, %c0_3, %c0_4] : memref<1x1x32xf32, #tpu.memory_space<vmem>>, vector<1x1x32xf32>
      tpu.vector_store %arg7[%c0, %c0_3, %c0_4], %18 {strides = array<i32>} : memref<1x1x32xf32, #tpu.memory_space<vmem>>, vector<1x1x32xf32>,
    } else {
    }
    %3 = arith.index_cast %arg0 : i32 to index
    %4 = memref.load %arg2[%3] : memref<2xi32, #tpu.memory_space<smem>>
    %5 = arith.cmpi slt, %arg1, %4 : i32
    %c1_i32 = arith.constant 1 : i32
    %6 = arith.addi %arg1, %c1_i32 : i32
    %c16_i32 = arith.constant 16 : i32
    %7 = arith.muli %6, %c16_i32 : i32
    %8 = arith.index_cast %arg0 : i32 to index
    %9 = memref.load %arg3[%8] : memref<2xi32, #tpu.memory_space<smem>>
    %10 = arith.cmpi sle, %7, %9 : i32
    %11 = arith.andi %5, %10 : i1
    %12 = arith.extui %11 : i1 to i32
    %c0_i32_1 = arith.constant 0 : i32
    %13 = arith.cmpi ne, %12, %c0_i32_1 : i32
    scf.if %13 {
      %c0 = arith.constant 0 : index
      %c0_3 = arith.constant 0 : index
      %c0_4 = arith.constant 0 : index
      %18 = vector.load %arg5[%c0, %c0_3, %c0_4] : memref<1x16x32xf32, #tpu.memory_space<vmem>>, vector<1x16x32xf32>
      %c0_5 = arith.constant 0 : index
      %c0_6 = arith.constant 0 : index
      %c0_7 = arith.constant 0 : index
      %19 = vector.load %arg6[%c0_5, %c0_6, %c0_7] : memref<1x16x32xf32, #tpu.memory_space<vmem>>, vector<1x16x32xf32>
      %20 = arith.subf %18, %19 : vector<1x16x32xf32>
      %21 = math.absf %20 : vector<1x16x32xf32>
      %c0_8 = arith.constant 0 : index
      %c0_9 = arith.constant 0 : index
      %c0_10 = arith.constant 0 : index
      %22 = vector.load %arg7[%c0_8, %c0_9, %c0_10] : memref<1x1x32xf32, #tpu.memory_space<vmem>>, vector<1x1x32xf32>
      %cst = arith.constant dense<0.000000e+00> : vector<1x32xf32>
      %23 = vector.multi_reduction <add>, %21, %cst [1] : vector<1x16x32xf32> to vector<1x32xf32>
      %24 = vector.shape_cast %23 : vector<1x32xf32> to vector<1x1x32xf32>
      %25 = arith.addf %22, %24 : vector<1x1x32xf32>
      %c0_11 = arith.constant 0 : index
      %c0_12 = arith.constant 0 : index
      %c0_13 = arith.constant 0 : index
      %26 = vector.load %arg7[%c0_11, %c0_12, %c0_13] : memref<1x1x32xf32, #tpu.memory_space<vmem>>, vector<1x1x32xf32>
      tpu.vector_store %arg7[%c0_11, %c0_12, %c0_13], %25 {strides = array<i32>} : memref<1x1x32xf32, #tpu.memory_space<vmem>>, vector<1x1x32xf32>,
    } else {
    }
    %true = arith.constant true
    %14 = arith.xori %10, %true : i1
    %15 = arith.andi %5, %14 : i1
    %16 = arith.extui %15 : i1 to i32
    %c0_i32_2 = arith.constant 0 : i32
    %17 = arith.cmpi ne, %16, %c0_i32_2 : i32
    scf.if %17 {
      %18 = tpu.iota {dimensions = array<i32: 1>} : vector<1x16x1xi32>
      %c0 = arith.constant 0 : index
      %c0_3 = arith.constant 0 : index
      %c0_4 = arith.constant 0 : index
      %19 = vector.load %arg4[%c0, %c0_3, %c0_4] : memref<1x1x1xi32, #tpu.memory_space<vmem>>, vector<1x1x1xi32>
      %c16_i32_5 = arith.constant 16 : i32
      %20 = arith.muli %arg1, %c16_i32_5 : i32
      %21 = vector.broadcast %20 : i32 to vector<1x1x1xi32>
      %22 = arith.subi %19, %21 : vector<1x1x1xi32>
      %23 = vector.broadcast %22 : vector<1x1x1xi32> to vector<1x16x1xi32>
      %24 = arith.cmpi slt, %18, %23 : vector<1x16x1xi32>
      %c0_6 = arith.constant 0 : index
      %c0_7 = arith.constant 0 : index
      %c0_8 = arith.constant 0 : index
      %25 = vector.load %arg5[%c0_6, %c0_7, %c0_8] : memref<1x16x32xf32, #tpu.memory_space<vmem>>, vector<1x16x32xf32>
      %c0_9 = arith.constant 0 : index
      %c0_10 = arith.constant 0 : index
      %c0_11 = arith.constant 0 : index
      %26 = vector.load %arg6[%c0_9, %c0_10, %c0_11] : memref<1x16x32xf32, #tpu.memory_space<vmem>>, vector<1x16x32xf32>
      %27 = arith.subf %25, %26 : vector<1x16x32xf32>
      %28 = math.absf %27 : vector<1x16x32xf32>
      %cst = arith.constant 0.000000e+00 : f32
      %29 = vector.shape_cast %24 : vector<1x16x1xi1> to vector<1x16x1xi1>
      %30 = vector.broadcast %29 : vector<1x16x1xi1> to vector<1x16x32xi1>
      %31 = vector.broadcast %cst : f32 to vector<1x16x32xf32>
      %32 = arith.select %30, %28, %31 : vector<1x16x32xi1>, vector<1x16x32xf32>
      %c0_12 = arith.constant 0 : index
      %c0_13 = arith.constant 0 : index
      %c0_14 = arith.constant 0 : index
      %33 = vector.load %arg7[%c0_12, %c0_13, %c0_14] : memref<1x1x32xf32, #tpu.memory_space<vmem>>, vector<1x1x32xf32>
      %cst_15 = arith.constant dense<0.000000e+00> : vector<1x32xf32>
      %34 = vector.multi_reduction <add>, %32, %cst_15 [1] : vector<1x16x32xf32> to vector<1x32xf32>
      %35 = vector.shape_cast %34 : vector<1x32xf32> to vector<1x1x32xf32>
      %36 = arith.addf %33, %35 : vector<1x1x32xf32>
      %c0_16 = arith.constant 0 : index
      %c0_17 = arith.constant 0 : index
      %c0_18 = arith.constant 0 : index
      %37 = vector.load %arg7[%c0_16, %c0_17, %c0_18] : memref<1x1x32xf32, #tpu.memory_space<vmem>>, vector<1x1x32xf32>
      tpu.vector_store %arg7[%c0_16, %c0_17, %c0_18], %36 {strides = array<i32>} : memref<1x1x32xf32, #tpu.memory_space<vmem>>, vector<1x1x32xf32>,
    } else {
    }
    return
  }
  func.func @transform_0(%arg0: i32, %arg1: i32, %arg2: memref<2xi32, #tpu.memory_space<smem>>, %arg3: memref<2xi32, #tpu.memory_space<smem>>) -> (i32, i32, i32) {
    %c0_i32 = arith.constant 0 : i32
    %c0_i32_0 = arith.constant 0 : i32
    %c0_i32_1 = arith.constant 0 : i32
    return %arg0, %c0_i32, %c0_i32_0 : i32, i32, i32
  }
  func.func @transform_1(%arg0: i32, %arg1: i32, %arg2: memref<2xi32, #tpu.memory_space<smem>>, %arg3: memref<2xi32, #tpu.memory_space<smem>>) -> (i32, i32, i32) {
    %0 = arith.index_cast %arg0 : i32 to index
    %1 = memref.load %arg2[%0] : memref<2xi32, #tpu.memory_space<smem>>
    %c1_i32 = arith.constant 1 : i32
    %2 = arith.subi %1, %c1_i32 : i32
    %3 = arith.minsi %arg1, %2 : i32
    %c0_i32 = arith.constant 0 : i32
    %c0_i32_0 = arith.constant 0 : i32
    return %arg0, %3, %c0_i32 : i32, i32, i32
  }
  func.func @transform_2(%arg0: i32, %arg1: i32, %arg2: memref<2xi32, #tpu.memory_space<smem>>, %arg3: memref<2xi32, #tpu.memory_space<smem>>) -> (i32, i32, i32) {
    %0 = arith.index_cast %arg0 : i32 to index
    %1 = memref.load %arg2[%0] : memref<2xi32, #tpu.memory_space<smem>>
    %c1_i32 = arith.constant 1 : i32
    %2 = arith.subi %1, %c1_i32 : i32
    %3 = arith.minsi %arg1, %2 : i32
    %c0_i32 = arith.constant 0 : i32
    %c0_i32_0 = arith.constant 0 : i32
    return %arg0, %3, %c0_i32 : i32, i32, i32
  }
  func.func @transform_3(%arg0: i32, %arg1: i32, %arg2: memref<2xi32, #tpu.memory_space<smem>>, %arg3: memref<2xi32, #tpu.memory_space<smem>>) -> (i32, i32, i32) {
    %c0_i32 = arith.constant 0 : i32
    %c0_i32_0 = arith.constant 0 : i32
    %c0_i32_1 = arith.constant 0 : i32
    return %arg0, %c0_i32, %c0_i32_0 : i32, i32, i32
  }
}

</mosaic_0001>

<llo_original>
// kernel: tpu_custom_call.1
$region0: #{tpu_custom_call.1}
  #allocation0 [shape = 'u32[]', space=smem, size = 0x4, offset = 0x4, fixed_abs, tag = 'smem constant byte address 0x4 - core index']
  #allocation1 [shape = 'u32[72,128]{1,0:T(1,128)}', space=vmem, size = 0x9000, scoped, tag = 'internal scratch']
  #allocation2 [shape = 's32[1]{0}', space=sflag, size = 0x4, scoped, tag = 'scoped memory for tpu_custom_call.1']
  #allocation3 [shape = 'u8[512]{0}', space=smem, size = 0x200, scoped, tag = 'prefetched SMEM operand 0']
  #allocation4 [shape = 'u8[512]{0}', space=smem, size = 0x200, scoped, tag = 'prefetched SMEM operand 1']
  %s0 = inlined_call_operand.vmem [shape: s32[2], index: 0, kind: input, shape index: {}]
  %s1 = inlined_call_operand.vmem [shape: s32[2], index: 1, kind: input, shape index: {}]
  %s2 = inlined_call_operand.vmem [shape: s32[2,1,1], index: 2, kind: input, shape index: {}]
  %s3 = inlined_call_operand.hbm [shape: f32[2,16,32], index: 3, kind: input, shape index: {}]
  %s4 = inlined_call_operand.hbm [shape: f32[2,16,32], index: 4, kind: input, shape index: {}]
  %s5 = inlined_call_operand.hbm [shape: f32[2,1,32], index: 5, kind: output, shape index: {}]
  %s6 = sld [smem:[#allocation0]]
  $region65: #{tpu_custom_call.1} parent=0
    _
  %s8 = ssub.s32 1, %s6
  %s9 = scalar_select 0, %s8, %s6
  %s11 = sshll.u32 %s0, 4
  %s12 = int_to_ptr.vmem [resolvable:$true] %s11
  %14 = dma.vmem_to_smem %s12, 16, [#allocation3], [#allocation2]
  %s16 = sshll.u32 %s1, 4
  %s17 = int_to_ptr.vmem [resolvable:$true] %s16
  %19 = dma.vmem_to_smem %s17, 16, [#allocation4], [#allocation2]
  %21 = dma.done [#allocation2], 32
  %22 = sfence
  $region1: #{tpu_custom_call.1} parent=0
    #allocation5 [shape = 'u8[16384]{0}', space=vmem, size = 0x4000, scoped, tag = 'input window, operand 3']
    #allocation6 [shape = 's32[2]{0}', space=sflag, size = 0x8, scoped, tag = 'scoped memory for tpu_custom_call.1']
    #allocation7 [shape = 's32[2]{0}', space=sflag, size = 0x8, scoped, tag = 'scoped memory for tpu_custom_call.1']
    #allocation8 [shape = 'u8[16384]{0}', space=vmem, size = 0x4000, scoped, tag = 'input window, operand 4']
    #allocation9 [shape = 's32[2]{0}', space=sflag, size = 0x8, scoped, tag = 'scoped memory for tpu_custom_call.1']
    #allocation10 [shape = 'u8[1024]{0}', space=vmem, size = 0x400, scoped, tag = 'output window, operand 0']
    %23 = vsyncpa [#allocation6], 0
    %s24 = scalar_lea.sflag [#allocation6], 1
    %25 = vsyncpa %s24, 0
    %26 = vsyncpa [#allocation9], 0
    %s27 = scalar_lea.sflag [#allocation9], 1
    %28 = vsyncpa %s27, 0
    %29 = vsyncpa [#allocation7], 0
    %s30 = scalar_lea.sflag [#allocation7], 1
    %31 = vsyncpa %s30, 0
    loop: start=0, step=1, limit=4
    $region2: #{tpu_custom_call.1} parent=1 // loop_pre_header
      _
    $region3: #{tpu_custom_call.1} parent=1 // loop_header
      %s33 = sphi 0, %s37
      %p34 = scmp.ge.s32.totalorder %s33, 4
      %s40 = sphi 0, %s52
      %s41 = sphi 0, %s48
      %s42 = sphi 0, %s40
      %s43 = sphi 0, %s41
      %s44 = sphi 0, %s42
      %s45 = sphi 0, %s43
      %s55 = sphi 0, %s57
      %s58 = sphi 0, %s55
      %s59 = sphi 0, %s58
      %s75 = sphi 0, %s59
      %s91 = sphi 0, %s93
      %s94 = sphi 0, %s91
      %s95 = sphi 0, %s94
      %s111 = sphi 0, %s95
      %s127 = sphi 0, %s129
      %s130 = sphi 0, %s127
      %s131 = sphi 0, %s130
      %s147 = sphi 0, %s131
      %s153 = sphi 0, %s155
      %s156 = sphi 0, %s153
      %s157 = sphi 0, %s156
      %s173 = sphi 0, %s157
    $region4: #{tpu_custom_call.1} parent=1 // loop_header_branch
      %36 = sbr.rel (%p34) target = $region8
    $region5: #{tpu_custom_call.1} parent=1 // loop_body
      %s38 = ssub.s32 %s33, 1
      %s39 = ssub.s32 %s33, 2
      %s46 = sadd.s32 1, %s41
      %p47 = scmp.ge.s32.totalorder %s46, 1
      %s48 = scalar_select %p47, 0, %s46
      %s49 = sadd.s32 1, %s40
      %s50 = scalar_select %p47, %s49, %s40
      %p51 = scmp.ge.s32.totalorder %s50, 2
      %s52 = scalar_select %p51, 0, %s50
      %s53 = ssub.s32 %s40, %s52
      %p54 = scmp.eq.s32.totalorder %s53, 0
      %s56 = sadd.s32 %s55, 1
      %s57 = scalar_select %p54, %s55, %s56
      %p60 = pneg %p54
      %p61 = scmp.eq.s32.totalorder %s33, 1
      %p62 = por %p60, %p61
      %p63 = scmp.ne.s32.totalorder %s55, %s58
      %p64 = scmp.eq.s32.totalorder %s33, 0
      %p65 = por %p63, %p64
      %p66 = scmp.ne.s32.totalorder %s55, %s58
      %p67 = scmp.eq.s32.totalorder %s38, 1
      %p68 = por %p66, %p67
      %p69 = scmp.ne.s32.totalorder %s58, %s59
      %p70 = scmp.eq.s32.totalorder %s38, 0
      %p71 = por %p69, %p70
      %p72 = scmp.ne.s32.totalorder %s58, %s59
      %p73 = scmp.eq.s32.totalorder %s39, 1
      %p74 = por %p72, %p73
      %p76 = scmp.ne.s32.totalorder %s59, %s75
      %p77 = scmp.eq.s32.totalorder %s39, 0
      %p78 = por %p76, %p77
      %s79 = sld [smem:[#allocation3 + %s40]]
      %s80 = ssub.s32 %s79, 1
      %p81 = scmp.lt.s32.totalorder %s41, %s80
      %s82 = scalar_select %p81, %s41, %s80
      %s83 = sld [smem:[#allocation3 + %s52]]
      %s84 = ssub.s32 %s83, 1
      %p85 = scmp.lt.s32.totalorder %s48, %s84
      %s86 = scalar_select %p85, %s48, %s84
      %s87 = ssub.s32 %s40, %s52
      %s88 = ssub.s32 %s82, %s86
      %s89 = sor.u32 %s87, %s88
      %p90 = scmp.eq.s32.totalorder %s89, 0
      %s92 = sadd.s32 %s91, 1
      %s93 = scalar_select %p90, %s91, %s92
      %p96 = pneg %p90
      %p97 = scmp.eq.s32.totalorder %s33, 1
      %p98 = por %p96, %p97
      %p99 = scmp.ne.s32.totalorder %s91, %s94
      %p100 = scmp.eq.s32.totalorder %s33, 0
      %p101 = por %p99, %p100
      %p102 = scmp.ne.s32.totalorder %s91, %s94
      %p103 = scmp.eq.s32.totalorder %s38, 1
      %p104 = por %p102, %p103
      %p105 = scmp.ne.s32.totalorder %s94, %s95
      %p106 = scmp.eq.s32.totalorder %s38, 0
      %p107 = por %p105, %p106
      %p108 = scmp.ne.s32.totalorder %s94, %s95
      %p109 = scmp.eq.s32.totalorder %s39, 1
      %p110 = por %p108, %p109
      %p112 = scmp.ne.s32.totalorder %s95, %s111
      %p113 = scmp.eq.s32.totalorder %s39, 0
      %p114 = por %p112, %p113
      %s115 = sld [smem:[#allocation3 + %s40]]
      %s116 = ssub.s32 %s115, 1
      %p117 = scmp.lt.s32.totalorder %s41, %s116
      %s118 = scalar_select %p117, %s41, %s116
      %s119 = sld [smem:[#allocation3 + %s52]]
      %s120 = ssub.s32 %s119, 1
      %p121 = scmp.lt.s32.totalorder %s48, %s120
      %s122 = scalar_select %p121, %s48, %s120
      %s123 = ssub.s32 %s40, %s52
      %s124 = ssub.s32 %s118, %s122
      %s125 = sor.u32 %s123, %s124
      %p126 = scmp.eq.s32.totalorder %s125, 0
      %s128 = sadd.s32 %s127, 1
      %s129 = scalar_select %p126, %s127, %s128
      %p132 = pneg %p126
      %p133 = scmp.eq.s32.totalorder %s33, 1
      %p134 = por %p132, %p133
      %p135 = scmp.ne.s32.totalorder %s127, %s130
      %p136 = scmp.eq.s32.totalorder %s33, 0
      %p137 = por %p135, %p136
      %p138 = scmp.ne.s32.totalorder %s127, %s130
      %p139 = scmp.eq.s32.totalorder %s38, 1
      %p140 = por %p138, %p139
      %p141 = scmp.ne.s32.totalorder %s130, %s131
      %p142 = scmp.eq.s32.totalorder %s38, 0
      %p143 = por %p141, %p142
      %p144 = scmp.ne.s32.totalorder %s130, %s131
      %p145 = scmp.eq.s32.totalorder %s39, 1
      %p146 = por %p144, %p145
      %p148 = scmp.ne.s32.totalorder %s131, %s147
      %p149 = scmp.eq.s32.totalorder %s39, 0
      %p150 = por %p148, %p149
      %s151 = ssub.s32 %s40, %s52
      %p152 = scmp.eq.s32.totalorder %s151, 0
      %s154 = sadd.s32 %s153, 1
      %s155 = scalar_select %p152, %s153, %s154
      %p158 = pneg %p152
      %p159 = scmp.eq.s32.totalorder %s33, 1
      %p160 = por %p158, %p159
      %p161 = scmp.ne.s32.totalorder %s153, %s156
      %p162 = scmp.eq.s32.totalorder %s33, 0
      %p163 = por %p161, %p162
      %p164 = scmp.ne.s32.totalorder %s153, %s156
      %p165 = scmp.eq.s32.totalorder %s38, 1
      %p166 = por %p164, %p165
      %p167 = scmp.ne.s32.totalorder %s156, %s157
      %p168 = scmp.eq.s32.totalorder %s38, 0
      %p169 = por %p167, %p168
      %p170 = scmp.ne.s32.totalorder %s156, %s157
      %p171 = scmp.eq.s32.totalorder %s39, 1
      %p172 = por %p170, %p171
      %p174 = scmp.ne.s32.totalorder %s157, %s173
      %p175 = scmp.eq.s32.totalorder %s39, 0
      %p176 = por %p174, %p175
      %p177 = scmp.le.s32.totalorder 1, %s33
      %p178 = scmp.lt.s32.totalorder %s33, 3
      %p179 = pnand %p177, %p178
      %p180 = pneg %p179
      // Predicated region
      $region9: #{tpu_custom_call.1} parent=5 // pred_check
        _
      $region10: #{tpu_custom_call.1} parent=5 // pred_check_branch
        %182 = sbr.rel (%p179) target = $region12
      $region11: #{tpu_custom_call.1} parent=5 // pred_region
        %s183 = ssub.s32 %s33, 1
      $region12: #{tpu_custom_call.1} parent=5 // pred_fallthru
        _
      %p184 = scmp.lt.s32.totalorder %s33, 2
      // Predicated region
      $region13: #{tpu_custom_call.1} parent=5 // pred_check
        %p185 = pneg %p184
      $region14: #{tpu_custom_call.1} parent=5 // pred_check_branch
        %187 = sbr.rel (%p185) target = $region16
      $region15: #{tpu_custom_call.1} parent=5 // pred_region
        // Predicated region
        $region17: #{tpu_custom_call.1} parent=15 // pred_check
          %p188 = pneg %p65
        $region18: #{tpu_custom_call.1} parent=15 // pred_check_branch
          %190 = sbr.rel (%p188) target = $region20
        $region19: #{tpu_custom_call.1} parent=15 // pred_region
          %p191 = scmp.lt.s32.totalorder %s40, 1
          %s192 = scalar_select %p191, %s40, 1
          %s193 = scalar_lea.vmem %s2, %s192
        $region20: #{tpu_custom_call.1} parent=15 // pred_fallthru
          _
        // Predicated region
        $region21: #{tpu_custom_call.1} parent=15 // pred_check
          %p194 = pneg %p101
        $region22: #{tpu_custom_call.1} parent=15 // pred_check_branch
          %196 = sbr.rel (%p194) target = $region24
        $region23: #{tpu_custom_call.1} parent=15 // pred_region
          %s197 = sand.u32 %s91, 1
          %s198 = scalar_lea.sflag [#allocation6], %s197
          %s199 = sand.u32 %s91, 1
          %s200 = smul.addr %s199, 16
          %s201 = scalar_lea.vmem [#allocation5], %s200
          %s202 = sld [smem:[#allocation3 + %s40]]
          %s203 = ssub.s32 %s202, 1
          %p204 = scmp.lt.s32.totalorder %s41, %s203
          %s205 = scalar_select %p204, %s41, %s203
          %s206 = smul.u32 2, %s205
          %208 = vsyncadd %s198, 0
          %s209 = smul.addr %s40, 2
          %s210 = sadd.s32 %s206, %s209
          %s211 = smul.addr %s210, 8
          %s212 = scalar_lea.hbm %s3, %s211
          %s213 = sshll.u32 %s212, 4
          %s214 = int_to_ptr.hbm [resolvable:$true] %s213
          %s215 = sshll.u32 %s201, 4
          %s216 = int_to_ptr.vmem [resolvable:$true] %s215
          %221 = dma.hbm_to_vmem [thread:$0]  %s214, 256, %s216, %s198, 128, 128, 8
        $region24: #{tpu_custom_call.1} parent=15 // pred_fallthru
          _
        // Predicated region
        $region25: #{tpu_custom_call.1} parent=15 // pred_check
          %p222 = pneg %p137
        $region26: #{tpu_custom_call.1} parent=15 // pred_check_branch
          %224 = sbr.rel (%p222) target = $region28
        $region27: #{tpu_custom_call.1} parent=15 // pred_region
          %s225 = sand.u32 %s127, 1
          %s226 = scalar_lea.sflag [#allocation9], %s225
          %s227 = sand.u32 %s127, 1
          %s228 = smul.addr %s227, 16
          %s229 = scalar_lea.vmem [#allocation8], %s228
          %s230 = sld [smem:[#allocation3 + %s40]]
          %s231 = ssub.s32 %s230, 1
          %p232 = scmp.lt.s32.totalorder %s41, %s231
          %s233 = scalar_select %p232, %s41, %s231
          %s234 = smul.u32 2, %s233
          %236 = vsyncadd %s226, 0
          %s237 = smul.addr %s40, 2
          %s238 = sadd.s32 %s234, %s237
          %s239 = smul.addr %s238, 8
          %s240 = scalar_lea.hbm %s4, %s239
          %s241 = sshll.u32 %s240, 4
          %s242 = int_to_ptr.hbm [resolvable:$true] %s241
          %s243 = sshll.u32 %s229, 4
          %s244 = int_to_ptr.vmem [resolvable:$true] %s243
          %249 = dma.hbm_to_vmem [thread:$0]  %s242, 256, %s244, %s226, 128, 128, 8
        $region28: #{tpu_custom_call.1} parent=15 // pred_fallthru
          _
      $region16: #{tpu_custom_call.1} parent=5 // pred_fallthru
        _
      %p250 = scmp.le.s32.totalorder 1, %s33
      %p251 = scmp.lt.s32.totalorder %s33, 3
      %p252 = pnand %p250, %p251
      %p253 = pneg %p252
      // Predicated region
      $region29: #{tpu_custom_call.1} parent=5 // pred_check
        _
      $region30: #{tpu_custom_call.1} parent=5 // pred_check_branch
        %255 = sbr.rel (%p252) target = $region32
      $region31: #{tpu_custom_call.1} parent=5 // pred_region
        %s256 = ssub.s32 %s33, 1
        %s257 = sand.u32 %s94, 1
        %s258 = scalar_lea.sflag [#allocation6], %s257
        %s259 = sand.u32 %s94, 1
        %s260 = smul.addr %s259, 16
        %s261 = scalar_lea.vmem [#allocation5], %s260
        // Predicated region
        $region33: #{tpu_custom_call.1} parent=31 // pred_check
          %p262 = pneg %p107
        $region34: #{tpu_custom_call.1} parent=31 // pred_check_branch
          %264 = sbr.rel (%p262) target = $region36
        $region35: #{tpu_custom_call.1} parent=31 // pred_region
          %266 = dma.done %s258, 256
        $region36: #{tpu_custom_call.1} parent=31 // pred_fallthru
          _
        %s267 = sand.u32 %s130, 1
        %s268 = scalar_lea.sflag [#allocation9], %s267
        %s269 = sand.u32 %s130, 1
        %s270 = smul.addr %s269, 16
        %s271 = scalar_lea.vmem [#allocation8], %s270
        // Predicated region
        $region37: #{tpu_custom_call.1} parent=31 // pred_check
          %p272 = pneg %p143
        $region38: #{tpu_custom_call.1} parent=31 // pred_check_branch
          %274 = sbr.rel (%p272) target = $region40
        $region39: #{tpu_custom_call.1} parent=31 // pred_region
          %276 = dma.done %s268, 256
        $region40: #{tpu_custom_call.1} parent=31 // pred_fallthru
          _
        %p277 = scmp.lt.s32.totalorder %s42, 1
        %s278 = scalar_select %p277, %s42, 1
        %s279 = scalar_lea.vmem %s2, %s278
        %p280 = pneg %p71
        %p281 = pneg %p68
        %s282 = sand.u32 %s94, 1
        %s283 = scalar_lea.sflag [#allocation6], %s282
        %s284 = sand.u32 %s94, 1
        %s285 = smul.addr %s284, 16
        %s286 = scalar_lea.vmem [#allocation5], %s285
        %p287 = pneg %p107
        %p288 = pneg %p104
        %s289 = sand.u32 %s130, 1
        %s290 = scalar_lea.sflag [#allocation9], %s289
        %s291 = sand.u32 %s130, 1
        %s292 = smul.addr %s291, 16
        %s293 = scalar_lea.vmem [#allocation8], %s292
        %p294 = pneg %p143
        %p295 = pneg %p140
        %p296 = pneg %p169
        %p297 = pneg %p166
        %s298 = sand.u32 %s156, 1
        %s299 = scalar_lea.sflag [#allocation7], %s298
        %s300 = sand.u32 %s156, 1
        %s301 = scalar_lea.vmem [#allocation10], %s300
        %p302 = scmp.lt.s32.totalorder %s42, 1
        %s303 = scalar_select %p302, %s42, 1
        %s304 = scalar_lea.vmem %s2, %s303
        %s305 = sld [smem:[#allocation3 + %s42]]
        %s306 = ssub.s32 %s305, 1
        %p307 = scmp.lt.s32.totalorder %s43, %s306
        %s308 = scalar_select %p307, %s43, %s306
        %s309 = smul.u32 2, %s308
        %s310 = sld [smem:[#allocation3 + %s42]]
        %s311 = ssub.s32 %s310, 1
        %p312 = scmp.lt.s32.totalorder %s43, %s311
        %s313 = scalar_select %p312, %s43, %s311
        %s314 = smul.u32 2, %s313
        %p315 = scmp.eq.s32.totalorder %s43, 0
        // Predicated region
        $region41: #{tpu_custom_call.1} parent=31 // pred_check
          %p316 = pneg %p315
        $region42: #{tpu_custom_call.1} parent=31 // pred_check_branch
          %318 = sbr.rel (%p316) target = $region44
        $region43: #{tpu_custom_call.1} parent=31 // pred_region
          %vm319 = vcmask 253952
          %320 = vst.msk [vmem:[%s301] sm:$0x1] %vm319, 0.0
        $region44: #{tpu_custom_call.1} parent=31 // pred_fallthru
          _
        %s321 = sld [smem:[#allocation3 + %s42]]
        %p322 = scmp.lt.s32.totalorder %s43, %s321
        %s323 = sadd.s32 %s43, 1
        %s324 = smul.u32 %s323, 16
        %s325 = sld [smem:[#allocation4 + %s42]]
        %p326 = scmp.le.s32.totalorder %s324, %s325
        %p327 = pnand %p322, %p326
        %p328 = pneg %p327
        // Predicated region
        $region45: #{tpu_custom_call.1} parent=31 // pred_check
          _
        $region46: #{tpu_custom_call.1} parent=31 // pred_check_branch
          %330 = sbr.rel (%p327) target = $region48
        $region47: #{tpu_custom_call.1} parent=31 // pred_region
          %v331 = vld [vmem:[%s261] sm:$0xff]
          %v332 = vld [vmem:[%s261 + $0x8] sm:$0xff]
          %v333 = vld [vmem:[%s271] sm:$0xff]
          %v334 = vld [vmem:[%s271 + $0x8] sm:$0xff]
          %v335 = vsub.f32 %v331, %v333
          %v336 = vsub.f32 %v332, %v334
          %v337 = vand.u32 2147483647, %v335
          %v338 = vand.u32 2147483647, %v336
          %v339 = vld [vmem:[%s301] sm:$0x1]
          %vm340 = vcmask 261120
          %v341 = vsel %vm340, %v337, 0.0
          %v342 = vsel %vm340, %v338, 0.0
          %v343 = vadd.f32 %v341, %v342
          %v344 = vrot.slane %v343, 4
          %v345 = vadd.f32 %v343, %v344
          %v346 = vrot.slane %v345, 2
          %v347 = vadd.f32 %v345, %v346
          %v348 = vrot.slane %v347, 1
          %v349 = vadd.f32 %v347, %v348
          %v350 = vadd.f32 %v339, %v349
          %vm351 = vcmask 253952
          %352 = vst.msk [vmem:[%s301] sm:$0x1] %vm351, %v350
        $region48: #{tpu_custom_call.1} parent=31 // pred_fallthru
          _
        %p353 = scmp.gt.s32.totalorder %s324, %s325
        %p354 = pnand %p322, %p353
        %p355 = pneg %p354
        // Predicated region
        $region49: #{tpu_custom_call.1} parent=31 // pred_check
          _
        $region50: #{tpu_custom_call.1} parent=31 // pred_check_branch
          %357 = sbr.rel (%p354) target = $region52
        $region51: #{tpu_custom_call.1} parent=31 // pred_region
          %v358 = vlaneseq
          %v359 = vshrl.u32 %v358, 7
          %v360 = vadd.s32 %v359, 8
          %v361 = vld [vmem:[%s304] sm:$0x1]
          %s362 = smul.u32 %s43, 16
          %v363 = vstv %s362
          %v364 = vsub.s32 %v361, %v363
          %v365 = vperm.slane %v364, 0
          %vm366 = vcmp.lt.s32.totalorder %v359, %v365
          %vm367 = vcmp.lt.s32.totalorder %v360, %v365
          %v368 = vld [vmem:[%s261] sm:$0xff]
          %v369 = vld [vmem:[%s261 + $0x8] sm:$0xff]
          %v370 = vld [vmem:[%s271] sm:$0xff]
          %v371 = vld [vmem:[%s271 + $0x8] sm:$0xff]
          %v372 = vsub.f32 %v368, %v370
          %v373 = vsub.f32 %v369, %v371
          %v374 = vand.u32 2147483647, %v372
          %v375 = vand.u32 2147483647, %v373
          %v376 = vsel %vm366, 1, 0
          %v377 = vsel %vm367, 1, 0
          %378 = vset.pattern.permute.xlu0 0
          %379 = vperm.xlu0 %378, %v376
          %v380 = vpop.permute.xlu0 %379
          %381 = vset.pattern.permute.xlu0 0
          %382 = vperm.xlu0 %381, %v377
          %v383 = vpop.permute.xlu0 %382
          %vm384 = vcmp.eq.s32.totalorder %v380, 1
          %vm385 = vcmp.eq.s32.totalorder %v383, 1
          %v386 = vsel %vm384, %v374, 0.0
          %v387 = vsel %vm385, %v375, 0.0
          %v388 = vld [vmem:[%s301] sm:$0x1]
          %vm389 = vcmask 261120
          %v390 = vsel %vm389, %v386, 0.0
          %v391 = vsel %vm389, %v387, 0.0
          %v392 = vadd.f32 %v390, %v391
          %v393 = vrot.slane %v392, 4
          %v394 = vadd.f32 %v392, %v393
          %v395 = vrot.slane %v394, 2
          %v396 = vadd.f32 %v394, %v395
          %v397 = vrot.slane %v396, 1
          %v398 = vadd.f32 %v396, %v397
          %v399 = vadd.f32 %v388, %v398
          %vm400 = vcmask 253952
          %401 = vst.msk [vmem:[%s301] sm:$0x1] %vm400, %v399
        $region52: #{tpu_custom_call.1} parent=31 // pred_fallthru
          _
        %s402 = sand.u32 %s156, 1
        %s403 = scalar_lea.sflag [#allocation7], %s402
        %s404 = sand.u32 %s156, 1
        %s405 = scalar_lea.vmem [#allocation10], %s404
        // Predicated region
        $region53: #{tpu_custom_call.1} parent=31 // pred_check
          %p406 = pneg %p166
        $region54: #{tpu_custom_call.1} parent=31 // pred_check_branch
          %408 = sbr.rel (%p406) target = $region56
        $region55: #{tpu_custom_call.1} parent=31 // pred_region
          %410 = vsyncadd %s403, 0
          %s411 = scalar_lea.hbm %s5, %s42
          %s413 = sshll.u32 %s405, 4
          %s414 = int_to_ptr.vmem [resolvable:$true] %s413
          %s415 = sshll.u32 %s411, 4
          %s416 = int_to_ptr.hbm [resolvable:$true] %s415
          %418 = dma.vmem_to_hbm [thread:$0]  %s414, 16, %s416, %s403
        $region56: #{tpu_custom_call.1} parent=31 // pred_fallthru
          _
      $region32: #{tpu_custom_call.1} parent=5 // pred_fallthru
        _
      %p419 = scmp.le.s32.totalorder 2, %s33
      // Predicated region
      $region57: #{tpu_custom_call.1} parent=5 // pred_check
        %p420 = pneg %p419
      $region58: #{tpu_custom_call.1} parent=5 // pred_check_branch
        %422 = sbr.rel (%p420) target = $region60
      $region59: #{tpu_custom_call.1} parent=5 // pred_region
        %s423 = ssub.s32 %s33, 2
        // Predicated region
        $region61: #{tpu_custom_call.1} parent=59 // pred_check
          %p424 = pneg %p172
        $region62: #{tpu_custom_call.1} parent=59 // pred_check_branch
          %426 = sbr.rel (%p424) target = $region64
        $region63: #{tpu_custom_call.1} parent=59 // pred_region
          %s427 = sand.u32 %s157, 1
          %s428 = scalar_lea.sflag [#allocation7], %s427
          %s429 = sand.u32 %s157, 1
          %s430 = scalar_lea.vmem [#allocation10], %s429
          %432 = dma.done %s428, 16
        $region64: #{tpu_custom_call.1} parent=59 // pred_fallthru
          _
      $region60: #{tpu_custom_call.1} parent=5 // pred_fallthru
        _
    $region6: #{tpu_custom_call.1} parent=1 // loop_footer
      %s37 = sadd.s32 1, %s33
    $region7: #{tpu_custom_call.1} parent=1 // loop_footer_branch
      %32 = sbr.rel target = $region3
    $region8: #{tpu_custom_call.1} parent=1 // loop_exit
      _
    %433 = vsyncpa [#allocation6], 1
    %s434 = scalar_lea.sflag [#allocation6], 1
    %435 = vsyncpa %s434, 1
    %436 = vsyncpa [#allocation9], 1
    %s437 = scalar_lea.sflag [#allocation9], 1
    %438 = vsyncpa %s437, 1
    %439 = vsyncpa [#allocation7], 1
    %s440 = scalar_lea.sflag [#allocation7], 1
    %441 = vsyncpa %s440, 1

</llo_original>
